<compile_context>
chip_gen: v5e
topology: v5e:2x2
jax: 0.10.0
libtpu: 0.0.40
codegen_flags: <defaults>
</compile_context>

<pallas_src>
import jax
import jax.numpy as jnp
from jax import lax
from jax.experimental import pallas as pl
from jax.experimental.pallas import tpu as pltpu

H = 30                 # nn.LSTM hidden size
HP = 32                # padded hidden size (lane-friendly)
G = 4 * HP             # packed gate width = 128 lanes
ROW_WIH = HP           # slab row holding W_ih (in_size = 1)
ROW_B = HP + 1         # slab row holding b_ih + b_hh
ROW_FC = HP + 2        # slab row holding fc weight (lanes 0..H-1) and fc bias (lane HP)
SLAB_ROWS = HP + 8     # 40 rows: sublane-aligned single weight slab


def lstm_bitcoin_kernel(x_ref, w_ref, out_ref):
    L = x_ref.shape[0]

    # static ref-views into the single coalesced weight slab (one DMA)
    w_hh = w_ref[0:HP, :]                  # (32, 128) recurrent weights, [in, gate*out]
    w_ih = w_ref[ROW_WIH:ROW_WIH + 1, :]   # (1, 128)  input weights (in_size = 1)
    b = w_ref[ROW_B:ROW_B + 1, :]          # (1, 128)  b_ih + b_hh
    fc = w_ref[ROW_FC:ROW_FC + 1, :]       # (1, 128)  lanes 0..29 = w_fc, lane 32 = b_fc

    h = jnp.zeros((1, HP), jnp.float32)
    c = jnp.zeros((1, HP), jnp.float32)

    def step(xw_t, h, c):
        # (1,32)@(32,128) on the MXU; gates vreg then gets 2 full-width EUP passes.
        gates = xw_t + jnp.dot(h, w_hh, preferred_element_type=jnp.float32)
        s = jax.nn.sigmoid(gates)          # one EUP pass over the full gate vreg
        tg = jnp.tanh(gates)               # one EUP pass over the full gate vreg
        i = s[:, 0 * HP:1 * HP]            # offset 0: no lane shift
        f = s[:, 1 * HP:2 * HP]            # single XLU lane rotate (by 32)
        g = tg[:, 2 * HP:3 * HP]           # single XLU lane rotate (by 64)
        o = s[:, 3 * HP:4 * HP]            # single XLU lane rotate (by 96)
        c = f * c + i * g
        h = o * jnp.tanh(c)
        return h, c

    if L <= 32:
        # Hoisted preamble: x_t * W_ih + b for every step as one (L,128) slab,
        # then a fully unrolled recurrence with h/c carried in vregs.
        xw = x_ref[...] * w_ih + b
        for t in range(L):
            h, c = step(xw[t:t + 1, :], h, c)
    else:
        # Scaling guard: modest unroll keeps compile time / i-mem / live ranges bounded.
        def body(t, carry):
            h, c = carry
            xw_t = x_ref[pl.ds(t, 1), :] * w_ih + b     # 2 VPU ops, hidden under chain
            return step(xw_t, h, c)

        h, c = lax.fori_loop(0, L, body, (h, c), unroll=8)

    # fc on the final hidden state == pred[-1]
    out_ref[...] = (jnp.sum(h * fc[:, 0:HP], axis=1, keepdims=True)
                    + fc[0:1, HP:HP + 1])


def pack_lstm_bitcoin_params(params):
    """Pack torch-shaped LSTM + Linear params into ONE (40, 128) f32 slab.

    Call once per parameter set, outside the per-inference hot path.
    """
    w_ih, w_hh, b_ih, b_hh, w_fc, b_fc = params  # (120,1),(120,30),(120,),(120,),(1,30),(1,)
    slab = jnp.zeros((SLAB_ROWS, G), jnp.float32)

    # W_hh: (4H, H) [gate*out, in]  ->  (HP, G) [in, gate*out], each gate padded 30->32
    w_hh_g = jnp.zeros((4, HP, HP), jnp.float32).at[:, :H, :H].set(w_hh.reshape(4, H, H))
    slab = slab.at[0:HP, :].set(jnp.transpose(w_hh_g, (2, 0, 1)).reshape(HP, G))

    # W_ih (in_size = 1) and combined bias, packed [gate, out] along 128 lanes
    slab = slab.at[ROW_WIH, :].set(
        jnp.zeros((4, HP), jnp.float32).at[:, :H].set(w_ih[:, 0].reshape(4, H)).reshape(G))
    slab = slab.at[ROW_B, :].set(
        jnp.zeros((4, HP), jnp.float32).at[:, :H].set((b_ih + b_hh).reshape(4, H)).reshape(G))

    # fc weight in lanes 0..H-1, fc bias stashed in lane HP (padded h lanes are 0)
    slab = slab.at[ROW_FC, :H].set(w_fc[0].astype(jnp.float32))
    slab = slab.at[ROW_FC, HP].set(b_fc[0].astype(jnp.float32))
    return slab


@jax.jit
def lstm_bitcoin_forward(seq, w_slab):
    """seq: (L,) f32.  w_slab: (40, 128) f32 from pack_lstm_bitcoin_params()."""
    L = seq.shape[0]
    x_col = seq.astype(jnp.float32).reshape(L, 1)
    out = pl.pallas_call(
        lstm_bitcoin_kernel,
        out_shape=jax.ShapeDtypeStruct((1, 1), jnp.float32),
        in_specs=[
            pl.BlockSpec(memory_space=pltpu.MemorySpace.VMEM),   # x column (L, 1)
            pl.BlockSpec(memory_space=pltpu.MemorySpace.VMEM),   # coalesced weight slab
        ],
        out_specs=pl.BlockSpec(memory_space=pltpu.MemorySpace.VMEM),
    )(x_col, w_slab)
    return out.reshape(1)   # matches torch pred[-1] shape (out_size,) = (1,)
    # TODO(synk): the PyTorch module carries self.hidden across forward calls; this
    # kernel models a fresh module (zero initial state).  For multi-sequence
    # throughput, batch along sublanes ((B,32)/(B,128) state) and shard the batch
    # grid axis across the two v7x TensorCores with dimension_semantics=("parallel",).


def lstm_bitcoin_ref(seq, params):
    """Pure-JAX reference (PyTorch LSTM equations, gate order i,f,g,o)."""
    w_ih, w_hh, b_ih, b_hh, w_fc, b_fc = params
    h = jnp.zeros((H,), jnp.float32)
    c = jnp.zeros((H,), jnp.float32)

    def step(carry, x_t):
        h, c = carry
        gates = w_ih[:, 0] * x_t + w_hh @ h + b_ih + b_hh
        i, f, g, o = jnp.split(gates, 4)
        i, f, o = jax.nn.sigmoid(i), jax.nn.sigmoid(f), jax.nn.sigmoid(o)
        g = jnp.tanh(g)
        c = f * c + i * g
        h = o * jnp.tanh(c)
        return (h, c), h

    (_, _), hs = lax.scan(step, (h, c), seq)
    pred = hs @ w_fc.T + b_fc
    return pred[-1]


if __name__ == "__main__":
    L = 8                                   # sequence length
    key = jax.random.PRNGKey(0)
    ks = jax.random.split(key, 7)
    bound = 1.0 / jnp.sqrt(jnp.float32(H))  # PyTorch default init range

    w_ih = jax.random.uniform(ks[0], (4 * H, 1), jnp.float32, -bound, bound)
    w_hh = jax.random.uniform(ks[1], (4 * H, H), jnp.float32, -bound, bound)
    b_ih = jax.random.uniform(ks[2], (4 * H,), jnp.float32, -bound, bound)
    b_hh = jax.random.uniform(ks[3], (4 * H,), jnp.float32, -bound, bound)
    w_fc = jax.random.uniform(ks[4], (1, H), jnp.float32, -bound, bound)
    b_fc = jax.random.uniform(ks[5], (1,), jnp.float32, -bound, bound)
    params = (w_ih, w_hh, b_ih, b_hh, w_fc, b_fc)

    seq = jax.random.normal(ks[6], (L,), jnp.float32)

    # Pack once (outside the hot path), then run the jitted forward.
    w_slab = jax.block_until_ready(pack_lstm_bitcoin_params(params))
    out = jax.block_until_ready(lstm_bitcoin_forward(seq, w_slab))
    ref = jax.block_until_ready(lstm_bitcoin_ref(seq, params))

    assert out.shape == (1,)
    assert jnp.allclose(out, ref, atol=1e-5, rtol=1e-5), (out, ref)
    print("KERNEL_OK")
</pallas_src>

<mosaic_0001>
module attributes {stable_mosaic.version = 11 : i64} {
  func.func @lstm_bitcoin_kernel(%arg0: memref<8x1xf32, #tpu.memory_space<vmem>>, %arg1: memref<40x128xf32, #tpu.memory_space<vmem>>, %arg2: memref<1x1xf32, #tpu.memory_space<vmem>>) attributes {dimension_semantics = [], scalar_prefetch = 0 : i64, scratch_operands = 0 : i64, tpu.core_type = #tpu.core_type<tc>} {
    %c0 = arith.constant 0 : index
    %c0_0 = arith.constant 0 : index
    %0 = vector.load %arg1[%c0, %c0_0] : memref<40x128xf32, #tpu.memory_space<vmem>>, vector<32x128xf32>
    %c32 = arith.constant 32 : index
    %c0_1 = arith.constant 0 : index
    %1 = vector.load %arg1[%c32, %c0_1] : memref<40x128xf32, #tpu.memory_space<vmem>>, vector<1x128xf32>
    %c33 = arith.constant 33 : index
    %c0_2 = arith.constant 0 : index
    %2 = vector.load %arg1[%c33, %c0_2] : memref<40x128xf32, #tpu.memory_space<vmem>>, vector<1x128xf32>
    %c34 = arith.constant 34 : index
    %c0_3 = arith.constant 0 : index
    %3 = vector.load %arg1[%c34, %c0_3] : memref<40x128xf32, #tpu.memory_space<vmem>>, vector<1x128xf32>
    %cst = arith.constant 0.000000e+00 : f32
    %4 = vector.broadcast %cst : f32 to vector<1x32xf32>
    %cst_4 = arith.constant 0.000000e+00 : f32
    %5 = vector.broadcast %cst_4 : f32 to vector<1x32xf32>
    %c0_5 = arith.constant 0 : index
    %c0_6 = arith.constant 0 : index
    %6 = vector.load %arg0[%c0_5, %c0_6] : memref<8x1xf32, #tpu.memory_space<vmem>>, vector<8x1xf32>
    %7 = vector.broadcast %6 : vector<8x1xf32> to vector<8x128xf32>
    %8 = vector.broadcast %1 : vector<1x128xf32> to vector<8x128xf32>
    %9 = arith.mulf %7, %8 : vector<8x128xf32>
    %10 = vector.broadcast %2 : vector<1x128xf32> to vector<8x128xf32>
    %11 = arith.addf %9, %10 : vector<8x128xf32>
    %12 = vector.extract_strided_slice %11 {offsets = [0, 0], sizes = [1, 128], strides = [1, 1]} : vector<8x128xf32> to vector<1x128xf32>
    %cst_7 = arith.constant dense<0.000000e+00> : vector<1x128xf32>
    %13 = tpu.matmul %4, %0, %cst_7 {dimension_numbers = #tpu.dot_dimension_numbers<[1], [0], [0], [1], [0, 0, 1, 1], [], []>} : vector<1x32xf32>, vector<32x128xf32>, vector<1x128xf32> -> vector<1x128xf32>
    %14 = arith.addf %12, %13 : vector<1x128xf32>
    %15 = arith.negf %14 : vector<1x128xf32>
    %16 = math.exp %15 : vector<1x128xf32>
    %cst_8 = arith.constant 1.000000e+00 : f32
    %17 = vector.broadcast %cst_8 : f32 to vector<1x128xf32>
    %18 = arith.addf %17, %16 : vector<1x128xf32>
    %19 = arith.divf %17, %18 : vector<1x128xf32>
    %20 = math.tanh %14 : vector<1x128xf32>
    %21 = vector.extract_strided_slice %19 {offsets = [0, 0], sizes = [1, 32], strides = [1, 1]} : vector<1x128xf32> to vector<1x32xf32>
    %22 = vector.extract_strided_slice %19 {offsets = [0, 32], sizes = [1, 32], strides = [1, 1]} : vector<1x128xf32> to vector<1x32xf32>
    %23 = vector.extract_strided_slice %20 {offsets = [0, 64], sizes = [1, 32], strides = [1, 1]} : vector<1x128xf32> to vector<1x32xf32>
    %24 = vector.extract_strided_slice %19 {offsets = [0, 96], sizes = [1, 32], strides = [1, 1]} : vector<1x128xf32> to vector<1x32xf32>
    %25 = arith.mulf %22, %5 : vector<1x32xf32>
    %26 = arith.mulf %21, %23 : vector<1x32xf32>
    %27 = arith.addf %25, %26 : vector<1x32xf32>
    %28 = math.tanh %27 : vector<1x32xf32>
    %29 = arith.mulf %24, %28 : vector<1x32xf32>
    %30 = vector.extract_strided_slice %11 {offsets = [1, 0], sizes = [1, 128], strides = [1, 1]} : vector<8x128xf32> to vector<1x128xf32>
    %cst_9 = arith.constant dense<0.000000e+00> : vector<1x128xf32>
    %31 = tpu.matmul %29, %0, %cst_9 {dimension_numbers = #tpu.dot_dimension_numbers<[1], [0], [0], [1], [0, 0, 1, 1], [], []>} : vector<1x32xf32>, vector<32x128xf32>, vector<1x128xf32> -> vector<1x128xf32>
    %32 = arith.addf %30, %31 : vector<1x128xf32>
    %33 = arith.negf %32 : vector<1x128xf32>
    %34 = math.exp %33 : vector<1x128xf32>
    %cst_10 = arith.constant 1.000000e+00 : f32
    %35 = vector.broadcast %cst_10 : f32 to vector<1x128xf32>
    %36 = arith.addf %35, %34 : vector<1x128xf32>
    %37 = arith.divf %35, %36 : vector<1x128xf32>
    %38 = math.tanh %32 : vector<1x128xf32>
    %39 = vector.extract_strided_slice %37 {offsets = [0, 0], sizes = [1, 32], strides = [1, 1]} : vector<1x128xf32> to vector<1x32xf32>
    %40 = vector.extract_strided_slice %37 {offsets = [0, 32], sizes = [1, 32], strides = [1, 1]} : vector<1x128xf32> to vector<1x32xf32>
    %41 = vector.extract_strided_slice %38 {offsets = [0, 64], sizes = [1, 32], strides = [1, 1]} : vector<1x128xf32> to vector<1x32xf32>
    %42 = vector.extract_strided_slice %37 {offsets = [0, 96], sizes = [1, 32], strides = [1, 1]} : vector<1x128xf32> to vector<1x32xf32>
    %43 = arith.mulf %40, %27 : vector<1x32xf32>
    %44 = arith.mulf %39, %41 : vector<1x32xf32>
    %45 = arith.addf %43, %44 : vector<1x32xf32>
    %46 = math.tanh %45 : vector<1x32xf32>
    %47 = arith.mulf %42, %46 : vector<1x32xf32>
    %48 = vector.extract_strided_slice %11 {offsets = [2, 0], sizes = [1, 128], strides = [1, 1]} : vector<8x128xf32> to vector<1x128xf32>
    %cst_11 = arith.constant dense<0.000000e+00> : vector<1x128xf32>
    %49 = tpu.matmul %47, %0, %cst_11 {dimension_numbers = #tpu.dot_dimension_numbers<[1], [0], [0], [1], [0, 0, 1, 1], [], []>} : vector<1x32xf32>, vector<32x128xf32>, vector<1x128xf32> -> vector<1x128xf32>
    %50 = arith.addf %48, %49 : vector<1x128xf32>
    %51 = arith.negf %50 : vector<1x128xf32>
    %52 = math.exp %51 : vector<1x128xf32>
    %cst_12 = arith.constant 1.000000e+00 : f32
    %53 = vector.broadcast %cst_12 : f32 to vector<1x128xf32>
    %54 = arith.addf %53, %52 : vector<1x128xf32>
    %55 = arith.divf %53, %54 : vector<1x128xf32>
    %56 = math.tanh %50 : vector<1x128xf32>
    %57 = vector.extract_strided_slice %55 {offsets = [0, 0], sizes = [1, 32], strides = [1, 1]} : vector<1x128xf32> to vector<1x32xf32>
    %58 = vector.extract_strided_slice %55 {offsets = [0, 32], sizes = [1, 32], strides = [1, 1]} : vector<1x128xf32> to vector<1x32xf32>
    %59 = vector.extract_strided_slice %56 {offsets = [0, 64], sizes = [1, 32], strides = [1, 1]} : vector<1x128xf32> to vector<1x32xf32>
    %60 = vector.extract_strided_slice %55 {offsets = [0, 96], sizes = [1, 32], strides = [1, 1]} : vector<1x128xf32> to vector<1x32xf32>
    %61 = arith.mulf %58, %45 : vector<1x32xf32>
    %62 = arith.mulf %57, %59 : vector<1x32xf32>
    %63 = arith.addf %61, %62 : vector<1x32xf32>
    %64 = math.tanh %63 : vector<1x32xf32>
    %65 = arith.mulf %60, %64 : vector<1x32xf32>
    %66 = vector.extract_strided_slice %11 {offsets = [3, 0], sizes = [1, 128], strides = [1, 1]} : vector<8x128xf32> to vector<1x128xf32>
    %cst_13 = arith.constant dense<0.000000e+00> : vector<1x128xf32>
    %67 = tpu.matmul %65, %0, %cst_13 {dimension_numbers = #tpu.dot_dimension_numbers<[1], [0], [0], [1], [0, 0, 1, 1], [], []>} : vector<1x32xf32>, vector<32x128xf32>, vector<1x128xf32> -> vector<1x128xf32>
    %68 = arith.addf %66, %67 : vector<1x128xf32>
    %69 = arith.negf %68 : vector<1x128xf32>
    %70 = math.exp %69 : vector<1x128xf32>
    %cst_14 = arith.constant 1.000000e+00 : f32
    %71 = vector.broadcast %cst_14 : f32 to vector<1x128xf32>
    %72 = arith.addf %71, %70 : vector<1x128xf32>
    %73 = arith.divf %71, %72 : vector<1x128xf32>
    %74 = math.tanh %68 : vector<1x128xf32>
    %75 = vector.extract_strided_slice %73 {offsets = [0, 0], sizes = [1, 32], strides = [1, 1]} : vector<1x128xf32> to vector<1x32xf32>
    %76 = vector.extract_strided_slice %73 {offsets = [0, 32], sizes = [1, 32], strides = [1, 1]} : vector<1x128xf32> to vector<1x32xf32>
    %77 = vector.extract_strided_slice %74 {offsets = [0, 64], sizes = [1, 32], strides = [1, 1]} : vector<1x128xf32> to vector<1x32xf32>
    %78 = vector.extract_strided_slice %73 {offsets = [0, 96], sizes = [1, 32], strides = [1, 1]} : vector<1x128xf32> to vector<1x32xf32>
    %79 = arith.mulf %76, %63 : vector<1x32xf32>
    %80 = arith.mulf %75, %77 : vector<1x32xf32>
    %81 = arith.addf %79, %80 : vector<1x32xf32>
    %82 = math.tanh %81 : vector<1x32xf32>
    %83 = arith.mulf %78, %82 : vector<1x32xf32>
    %84 = vector.extract_strided_slice %11 {offsets = [4, 0], sizes = [1, 128], strides = [1, 1]} : vector<8x128xf32> to vector<1x128xf32>
    %cst_15 = arith.constant dense<0.000000e+00> : vector<1x128xf32>
    %85 = tpu.matmul %83, %0, %cst_15 {dimension_numbers = #tpu.dot_dimension_numbers<[1], [0], [0], [1], [0, 0, 1, 1], [], []>} : vector<1x32xf32>, vector<32x128xf32>, vector<1x128xf32> -> vector<1x128xf32>
    %86 = arith.addf %84, %85 : vector<1x128xf32>
    %87 = arith.negf %86 : vector<1x128xf32>
    %88 = math.exp %87 : vector<1x128xf32>
    %cst_16 = arith.constant 1.000000e+00 : f32
    %89 = vector.broadcast %cst_16 : f32 to vector<1x128xf32>
    %90 = arith.addf %89, %88 : vector<1x128xf32>
    %91 = arith.divf %89, %90 : vector<1x128xf32>
    %92 = math.tanh %86 : vector<1x128xf32>
    %93 = vector.extract_strided_slice %91 {offsets = [0, 0], sizes = [1, 32], strides = [1, 1]} : vector<1x128xf32> to vector<1x32xf32>
    %94 = vector.extract_strided_slice %91 {offsets = [0, 32], sizes = [1, 32], strides = [1, 1]} : vector<1x128xf32> to vector<1x32xf32>
    %95 = vector.extract_strided_slice %92 {offsets = [0, 64], sizes = [1, 32], strides = [1, 1]} : vector<1x128xf32> to vector<1x32xf32>
    %96 = vector.extract_strided_slice %91 {offsets = [0, 96], sizes = [1, 32], strides = [1, 1]} : vector<1x128xf32> to vector<1x32xf32>
    %97 = arith.mulf %94, %81 : vector<1x32xf32>
    %98 = arith.mulf %93, %95 : vector<1x32xf32>
    %99 = arith.addf %97, %98 : vector<1x32xf32>
    %100 = math.tanh %99 : vector<1x32xf32>
    %101 = arith.mulf %96, %100 : vector<1x32xf32>
    %102 = vector.extract_strided_slice %11 {offsets = [5, 0], sizes = [1, 128], strides = [1, 1]} : vector<8x128xf32> to vector<1x128xf32>
    %cst_17 = arith.constant dense<0.000000e+00> : vector<1x128xf32>
    %103 = tpu.matmul %101, %0, %cst_17 {dimension_numbers = #tpu.dot_dimension_numbers<[1], [0], [0], [1], [0, 0, 1, 1], [], []>} : vector<1x32xf32>, vector<32x128xf32>, vector<1x128xf32> -> vector<1x128xf32>
    %104 = arith.addf %102, %103 : vector<1x128xf32>
    %105 = arith.negf %104 : vector<1x128xf32>
    %106 = math.exp %105 : vector<1x128xf32>
    %cst_18 = arith.constant 1.000000e+00 : f32
    %107 = vector.broadcast %cst_18 : f32 to vector<1x128xf32>
    %108 = arith.addf %107, %106 : vector<1x128xf32>
    %109 = arith.divf %107, %108 : vector<1x128xf32>
    %110 = math.tanh %104 : vector<1x128xf32>
    %111 = vector.extract_strided_slice %109 {offsets = [0, 0], sizes = [1, 32], strides = [1, 1]} : vector<1x128xf32> to vector<1x32xf32>
    %112 = vector.extract_strided_slice %109 {offsets = [0, 32], sizes = [1, 32], strides = [1, 1]} : vector<1x128xf32> to vector<1x32xf32>
    %113 = vector.extract_strided_slice %110 {offsets = [0, 64], sizes = [1, 32], strides = [1, 1]} : vector<1x128xf32> to vector<1x32xf32>
    %114 = vector.extract_strided_slice %109 {offsets = [0, 96], sizes = [1, 32], strides = [1, 1]} : vector<1x128xf32> to vector<1x32xf32>
    %115 = arith.mulf %112, %99 : vector<1x32xf32>
    %116 = arith.mulf %111, %113 : vector<1x32xf32>
    %117 = arith.addf %115, %116 : vector<1x32xf32>
    %118 = math.tanh %117 : vector<1x32xf32>
    %119 = arith.mulf %114, %118 : vector<1x32xf32>
    %120 = vector.extract_strided_slice %11 {offsets = [6, 0], sizes = [1, 128], strides = [1, 1]} : vector<8x128xf32> to vector<1x128xf32>
    %cst_19 = arith.constant dense<0.000000e+00> : vector<1x128xf32>
    %121 = tpu.matmul %119, %0, %cst_19 {dimension_numbers = #tpu.dot_dimension_numbers<[1], [0], [0], [1], [0, 0, 1, 1], [], []>} : vector<1x32xf32>, vector<32x128xf32>, vector<1x128xf32> -> vector<1x128xf32>
    %122 = arith.addf %120, %121 : vector<1x128xf32>
    %123 = arith.negf %122 : vector<1x128xf32>
    %124 = math.exp %123 : vector<1x128xf32>
    %cst_20 = arith.constant 1.000000e+00 : f32
    %125 = vector.broadcast %cst_20 : f32 to vector<1x128xf32>
    %126 = arith.addf %125, %124 : vector<1x128xf32>
    %127 = arith.divf %125, %126 : vector<1x128xf32>
    %128 = math.tanh %122 : vector<1x128xf32>
    %129 = vector.extract_strided_slice %127 {offsets = [0, 0], sizes = [1, 32], strides = [1, 1]} : vector<1x128xf32> to vector<1x32xf32>
    %130 = vector.extract_strided_slice %127 {offsets = [0, 32], sizes = [1, 32], strides = [1, 1]} : vector<1x128xf32> to vector<1x32xf32>
    %131 = vector.extract_strided_slice %128 {offsets = [0, 64], sizes = [1, 32], strides = [1, 1]} : vector<1x128xf32> to vector<1x32xf32>
    %132 = vector.extract_strided_slice %127 {offsets = [0, 96], sizes = [1, 32], strides = [1, 1]} : vector<1x128xf32> to vector<1x32xf32>
    %133 = arith.mulf %130, %117 : vector<1x32xf32>
    %134 = arith.mulf %129, %131 : vector<1x32xf32>
    %135 = arith.addf %133, %134 : vector<1x32xf32>
    %136 = math.tanh %135 : vector<1x32xf32>
    %137 = arith.mulf %132, %136 : vector<1x32xf32>
    %138 = vector.extract_strided_slice %11 {offsets = [7, 0], sizes = [1, 128], strides = [1, 1]} : vector<8x128xf32> to vector<1x128xf32>
    %cst_21 = arith.constant dense<0.000000e+00> : vector<1x128xf32>
    %139 = tpu.matmul %137, %0, %cst_21 {dimension_numbers = #tpu.dot_dimension_numbers<[1], [0], [0], [1], [0, 0, 1, 1], [], []>} : vector<1x32xf32>, vector<32x128xf32>, vector<1x128xf32> -> vector<1x128xf32>
    %140 = arith.addf %138, %139 : vector<1x128xf32>
    %141 = arith.negf %140 : vector<1x128xf32>
    %142 = math.exp %141 : vector<1x128xf32>
    %cst_22 = arith.constant 1.000000e+00 : f32
    %143 = vector.broadcast %cst_22 : f32 to vector<1x128xf32>
    %144 = arith.addf %143, %142 : vector<1x128xf32>
    %145 = arith.divf %143, %144 : vector<1x128xf32>
    %146 = math.tanh %140 : vector<1x128xf32>
    %147 = vector.extract_strided_slice %145 {offsets = [0, 0], sizes = [1, 32], strides = [1, 1]} : vector<1x128xf32> to vector<1x32xf32>
    %148 = vector.extract_strided_slice %145 {offsets = [0, 32], sizes = [1, 32], strides = [1, 1]} : vector<1x128xf32> to vector<1x32xf32>
    %149 = vector.extract_strided_slice %146 {offsets = [0, 64], sizes = [1, 32], strides = [1, 1]} : vector<1x128xf32> to vector<1x32xf32>
    %150 = vector.extract_strided_slice %145 {offsets = [0, 96], sizes = [1, 32], strides = [1, 1]} : vector<1x128xf32> to vector<1x32xf32>
    %151 = arith.mulf %148, %135 : vector<1x32xf32>
    %152 = arith.mulf %147, %149 : vector<1x32xf32>
    %153 = arith.addf %151, %152 : vector<1x32xf32>
    %154 = math.tanh %153 : vector<1x32xf32>
    %155 = arith.mulf %150, %154 : vector<1x32xf32>
    %156 = vector.extract_strided_slice %3 {offsets = [0, 0], sizes = [1, 32], strides = [1, 1]} : vector<1x128xf32> to vector<1x32xf32>
    %157 = arith.mulf %155, %156 : vector<1x32xf32>
    %cst_23 = arith.constant dense<0.000000e+00> : vector<1xf32>
    %158 = vector.multi_reduction <add>, %157, %cst_23 [1] : vector<1x32xf32> to vector<1xf32>
    %159 = vector.shape_cast %158 : vector<1xf32> to vector<1x1xf32>
    %160 = vector.extract_strided_slice %3 {offsets = [0, 32], sizes = [1, 1], strides = [1, 1]} : vector<1x128xf32> to vector<1x1xf32>
    %161 = arith.addf %159, %160 : vector<1x1xf32>
    %c0_24 = arith.constant 0 : index
    %c0_25 = arith.constant 0 : index
    %162 = vector.load %arg2[%c0_24, %c0_25] : memref<1x1xf32, #tpu.memory_space<vmem>>, vector<1x1xf32>
    tpu.vector_store %arg2[%c0_24, %c0_25], %161 {strides = array<i32>} : memref<1x1xf32, #tpu.memory_space<vmem>>, vector<1x1xf32>,
    return
  }
}

</mosaic_0001>

<llo_original>
// kernel: lstm_bitcoin_forward.1
$region0: #{lstm_bitcoin_forward.1}
  #allocation0 [shape = 'u32[]', space=smem, size = 0x4, offset = 0x4, fixed_abs, tag = 'smem constant byte address 0x4 - core index']
  #allocation1 [shape = 'u32[72,128]{1,0:T(1,128)}', space=vmem, size = 0x9000, scoped, tag = 'internal scratch']
  %s0 = inlined_call_operand.vmem [shape: f32[8,1], index: 0, kind: input, shape index: {}]
  %s1 = inlined_call_operand.hbm [shape: f32[40,128], index: 1, kind: input, shape index: {}]
  %s2 = inlined_call_operand.hbm [shape: f32[1,1], index: 2, kind: output, shape index: {}]
  %s3 = sld [smem:[#allocation0]]
  $region22: #{lstm_bitcoin_forward.1} parent=0
    _
  %s5 = ssub.s32 1, %s3
  %s6 = scalar_select 0, %s5, %s3
  $region1: #{lstm_bitcoin_forward.1} parent=0
    #allocation2 [shape = 'u8[20480]{0}', space=vmem, size = 0x5000, scoped, tag = 'input window, operand 1, single buffered']
    #allocation3 [shape = 's32[1]{0}', space=sflag, size = 0x4, scoped, tag = 'scoped memory for lstm_bitcoin_forward.1']
    #allocation4 [shape = 's32[1]{0}', space=sflag, size = 0x4, scoped, tag = 'scoped memory for lstm_bitcoin_forward.1']
    #allocation5 [shape = 'u8[512]{0}', space=vmem, size = 0x400, scoped, tag = 'output window, operand 0, single buffered']
    %7 = vsyncpa [#allocation3], 0
    %8 = vsyncpa [#allocation4], 0
    // Predicated region
    $region2: #{lstm_bitcoin_forward.1} parent=1 // pred_check
      _
    $region3: #{lstm_bitcoin_forward.1} parent=1 // pred_check_branch
      %10 = sbr.rel (0) target = $region5
    $region4: #{lstm_bitcoin_forward.1} parent=1 // pred_region
      _
    $region5: #{lstm_bitcoin_forward.1} parent=1 // pred_fallthru
      _
    // Predicated region
    $region6: #{lstm_bitcoin_forward.1} parent=1 // pred_check
      _
    $region7: #{lstm_bitcoin_forward.1} parent=1 // pred_check_branch
      %12 = sbr.rel (0) target = $region9
    $region8: #{lstm_bitcoin_forward.1} parent=1 // pred_region
      %14 = vsyncadd [#allocation3], 0
      %s15 = sshll.u32 %s1, 4
      %s16 = int_to_ptr.hbm [resolvable:$true] %s15
      %s17 = sshll.u32 [#allocation2], 4
      %s18 = int_to_ptr.vmem [resolvable:$true] %s17
      %23 = dma.hbm_to_vmem [thread:$0]  %s16, 640, %s18, [#allocation3], 128, 128, 8
    $region9: #{lstm_bitcoin_forward.1} parent=1 // pred_fallthru
      _
    // Predicated region
    $region10: #{lstm_bitcoin_forward.1} parent=1 // pred_check
      _
    $region11: #{lstm_bitcoin_forward.1} parent=1 // pred_check_branch
      %25 = sbr.rel (0) target = $region13
    $region12: #{lstm_bitcoin_forward.1} parent=1 // pred_region
      %27 = dma.done [#allocation3], 640
    $region13: #{lstm_bitcoin_forward.1} parent=1 // pred_fallthru
      _
    %v28 = vld [vmem:[#allocation2] sm:$0xff]
    %v29 = vld [vmem:[#allocation2 + $0x8] sm:$0xff]
    %v30 = vld [vmem:[#allocation2 + $0x10] sm:$0xff]
    %v31 = vld [vmem:[#allocation2 + $0x18] sm:$0xff]
    %v32 = vld [vmem:[#allocation2 + $0x20] sm:$0x1]
    %v33 = vld [vmem:[#allocation2 + $0x21] sm:$0x1]
    %v34 = vld [vmem:[#allocation2 + $0x22] sm:$0x1]
    %v35 = vld [vmem:[%s0] sm:$0xff]
    %37 = vset.pattern.permute.xlu0 0
    %38 = vperm.xlu0 %37, %v35
    %v39 = vpop.permute.xlu0 %38
    %v41 = vperm.slane %v32, 0
    %v42 = vmul.f32 %v39, %v41
    %v43 = vperm.slane %v33, 0
    %v44 = vadd.f32 %v42, %v43
    %vm45 = vcmask 261120
    %v47 = vsel %vm45, 0.0, 0
    %49 = vmatpush.msra.mxu0 0.0
    %50 = vmatpush.msra.mxu0 0.0
    %51 = vmatpush.msra.mxu0 0.0
    %52 = vmatpush.msra.mxu0 0.0
    %53 = vmatpush.msra.mxu0 0.0
    %54 = vmatpush.msra.mxu0 0.0
    %55 = vmatpush.msra.mxu0 0.0
    %56 = vmatpush.msra.mxu0 0.0
    %57 = vmatpush.msra.mxu0 0.0
    %58 = vmatpush.msra.mxu0 0.0
    %59 = vmatpush.msra.mxu0 0.0
    %60 = vmatpush.msra.mxu0 0.0
    %61 = vmatpush.msra.mxu0 %v31
    %62 = vmatpush.msra.mxu0 %v30
    %63 = vmatpush.msra.mxu0 %v29
    %64 = vmatpush.msra.mxu0 %v28
    %65 = vmatmul.f32.gmra.mxu0 %v47
    %v66 = vpop.f32.mrf.mxu0
    %v67 = vadd.f32 0.0, %v66
    %68 = vdwg.mxu0
    %v69 = vadd.f32 %v44, %v67
    %v70 = vxor.u32 %v69, 2147483648
    %v71 = vmul.f32 %v70, 1.442695
    %v72 = vpow.pop %v71
    %v73 = vadd.f32 %v72, 1.0
    %v74 = vrcp.pop %v73
    %v75 = vmul.f32 %v73, %v74
    %v76 = vsub.f32 1.0, %v75
    %v77 = vmul.f32 %v74, %v76
    %v78 = vadd.f32 %v74, %v77
    %vm79 = vweird.f32 %v73
    %vm80 = vweird.f32 %v74
    %vm81 = vmor %vm79, %vm80
    %v82 = vsel %vm81, %v74, %v78
    %v83 = vand.u32 2147483647, %v73
    %vm84 = vcmp.eq.f32.partialorder %v83, 8.507059e+37
    %v85 = vand.u32 %v73, 2147483648
    %v86 = vor.u32 1.1754944e-38, %v85
    %v87 = vsel %vm84, %v86, %v82
    %v88 = vmul.f32 1.0, %v87
    %v89 = vtanh.pop %v69
    %v90 = vmul.f32 %v88, 0.0
    %92 = vrot.lane.b32.xlu0 %v89, 64
    %v93 = vpop.permute.xlu0 %92
    %v95 = vmul.f32 %v88, %v93
    %97 = vrot.lane.b32.xlu0 %v95, 32
    %v98 = vpop.permute.xlu0 %97
    %v100 = vadd.f32 %v90, %v98
    %v101 = vtanh.pop %v100
    %103 = vrot.lane.b32.xlu0 %v101, 64
    %v104 = vpop.permute.xlu0 %103
    %v106 = vmul.f32 %v88, %v104
    %108 = vrot.lane.b32.xlu0 %v106, 32
    %v109 = vpop.permute.xlu0 %108
    %v110 = vsel %vm45, %v109, 0
    %112 = vmatpush.msra.mxu0 0.0
    %113 = vmatpush.msra.mxu0 0.0
    %114 = vmatpush.msra.mxu0 0.0
    %115 = vmatpush.msra.mxu0 0.0
    %116 = vmatpush.msra.mxu0 0.0
    %117 = vmatpush.msra.mxu0 0.0
    %118 = vmatpush.msra.mxu0 0.0
    %119 = vmatpush.msra.mxu0 0.0
    %120 = vmatpush.msra.mxu0 0.0
    %121 = vmatpush.msra.mxu0 0.0
    %122 = vmatpush.msra.mxu0 0.0
    %123 = vmatpush.msra.mxu0 0.0
    %124 = vmatpush.msra.mxu0 %v31
    %125 = vmatpush.msra.mxu0 %v30
    %126 = vmatpush.msra.mxu0 %v29
    %127 = vmatpush.msra.mxu0 %v28
    %128 = vmatmul.f32.gmra.mxu0 %v110
    %v129 = vpop.f32.mrf.mxu0
    %v130 = vadd.f32 0.0, %v129
    %131 = vdwg.mxu0
    %v133 = vrot.slane %v130, 7
    %v135 = vadd.f32 %v44, %v133
    %v136 = vxor.u32 %v135, 2147483648
    %v137 = vmul.f32 %v136, 1.442695
    %v138 = vpow.pop %v137
    %v139 = vadd.f32 %v138, 1.0
    %v140 = vrcp.pop %v139
    %v141 = vmul.f32 %v139, %v140
    %v142 = vsub.f32 1.0, %v141
    %v143 = vmul.f32 %v140, %v142
    %v144 = vadd.f32 %v140, %v143
    %vm145 = vweird.f32 %v139
    %vm146 = vweird.f32 %v140
    %vm147 = vmor %vm145, %vm146
    %v148 = vsel %vm147, %v140, %v144
    %v149 = vand.u32 2147483647, %v139
    %vm150 = vcmp.eq.f32.partialorder %v149, 8.507059e+37
    %v151 = vand.u32 %v139, 2147483648
    %v152 = vor.u32 1.1754944e-38, %v151
    %v153 = vsel %vm150, %v152, %v148
    %v154 = vmul.f32 1.0, %v153
    %v155 = vtanh.pop %v135
    %v157 = vrot.slane %v100, 7
    %v159 = vmul.f32 %v154, %v157
    %161 = vrot.lane.b32.xlu0 %v155, 64
    %v162 = vpop.permute.xlu0 %161
    %v164 = vmul.f32 %v154, %v162
    %166 = vrot.lane.b32.xlu0 %v164, 32
    %v167 = vpop.permute.xlu0 %166
    %v169 = vadd.f32 %v159, %v167
    %v170 = vtanh.pop %v169
    %172 = vrot.lane.b32.xlu0 %v170, 64
    %v173 = vpop.permute.xlu0 %172
    %v175 = vmul.f32 %v154, %v173
    %v177 = vrot.slane %v175, 1
    %178 = vrot.lane.b32.xlu0 %v177, 32
    %v179 = vpop.permute.xlu0 %178
    %v180 = vsel %vm45, %v179, 0
    %182 = vmatpush.msra.mxu0 0.0
    %183 = vmatpush.msra.mxu0 0.0
    %184 = vmatpush.msra.mxu0 0.0
    %185 = vmatpush.msra.mxu0 0.0
    %186 = vmatpush.msra.mxu0 0.0
    %187 = vmatpush.msra.mxu0 0.0
    %188 = vmatpush.msra.mxu0 0.0
    %189 = vmatpush.msra.mxu0 0.0
    %190 = vmatpush.msra.mxu0 0.0
    %191 = vmatpush.msra.mxu0 0.0
    %192 = vmatpush.msra.mxu0 0.0
    %193 = vmatpush.msra.mxu0 0.0
    %194 = vmatpush.msra.mxu0 %v31
    %195 = vmatpush.msra.mxu0 %v30
    %196 = vmatpush.msra.mxu0 %v29
    %197 = vmatpush.msra.mxu0 %v28
    %198 = vmatmul.f32.gmra.mxu0 %v180
    %v199 = vpop.f32.mrf.mxu0
    %v200 = vadd.f32 0.0, %v199
    %201 = vdwg.mxu0
    %v203 = vrot.slane %v200, 6
    %v205 = vadd.f32 %v44, %v203
    %v206 = vxor.u32 %v205, 2147483648
    %v207 = vmul.f32 %v206, 1.442695
    %v208 = vpow.pop %v207
    %v209 = vadd.f32 %v208, 1.0
    %v210 = vrcp.pop %v209
    %v211 = vmul.f32 %v209, %v210
    %v212 = vsub.f32 1.0, %v211
    %v213 = vmul.f32 %v210, %v212
    %v214 = vadd.f32 %v210, %v213
    %vm215 = vweird.f32 %v209
    %vm216 = vweird.f32 %v210
    %vm217 = vmor %vm215, %vm216
    %v218 = vsel %vm217, %v210, %v214
    %v219 = vand.u32 2147483647, %v209
    %vm220 = vcmp.eq.f32.partialorder %v219, 8.507059e+37
    %v221 = vand.u32 %v209, 2147483648
    %v222 = vor.u32 1.1754944e-38, %v221
    %v223 = vsel %vm220, %v222, %v218
    %v224 = vmul.f32 1.0, %v223
    %v225 = vtanh.pop %v205
    %v227 = vrot.slane %v169, 7
    %v229 = vmul.f32 %v224, %v227
    %231 = vrot.lane.b32.xlu0 %v225, 64
    %v232 = vpop.permute.xlu0 %231
    %v234 = vmul.f32 %v224, %v232
    %236 = vrot.lane.b32.xlu0 %v234, 32
    %v237 = vpop.permute.xlu0 %236
    %v239 = vadd.f32 %v229, %v237
    %v240 = vtanh.pop %v239
    %242 = vrot.lane.b32.xlu0 %v240, 64
    %v243 = vpop.permute.xlu0 %242
    %v245 = vmul.f32 %v224, %v243
    %v247 = vrot.slane %v245, 2
    %248 = vrot.lane.b32.xlu0 %v247, 32
    %v249 = vpop.permute.xlu0 %248
    %v250 = vsel %vm45, %v249, 0
    %252 = vmatpush.msra.mxu0 0.0
    %253 = vmatpush.msra.mxu0 0.0
    %254 = vmatpush.msra.mxu0 0.0
    %255 = vmatpush.msra.mxu0 0.0
    %256 = vmatpush.msra.mxu0 0.0
    %257 = vmatpush.msra.mxu0 0.0
    %258 = vmatpush.msra.mxu0 0.0
    %259 = vmatpush.msra.mxu0 0.0
    %260 = vmatpush.msra.mxu0 0.0
    %261 = vmatpush.msra.mxu0 0.0
    %262 = vmatpush.msra.mxu0 0.0
    %263 = vmatpush.msra.mxu0 0.0
    %264 = vmatpush.msra.mxu0 %v31
    %265 = vmatpush.msra.mxu0 %v30
    %266 = vmatpush.msra.mxu0 %v29
    %267 = vmatpush.msra.mxu0 %v28
    %268 = vmatmul.f32.gmra.mxu0 %v250
    %v269 = vpop.f32.mrf.mxu0
    %v270 = vadd.f32 0.0, %v269
    %271 = vdwg.mxu0
    %v273 = vrot.slane %v270, 5
    %v275 = vadd.f32 %v44, %v273
    %v276 = vxor.u32 %v275, 2147483648
    %v277 = vmul.f32 %v276, 1.442695
    %v278 = vpow.pop %v277
    %v279 = vadd.f32 %v278, 1.0
    %v280 = vrcp.pop %v279
    %v281 = vmul.f32 %v279, %v280
    %v282 = vsub.f32 1.0, %v281
    %v283 = vmul.f32 %v280, %v282
    %v284 = vadd.f32 %v280, %v283
    %vm285 = vweird.f32 %v279
    %vm286 = vweird.f32 %v280
    %vm287 = vmor %vm285, %vm286
    %v288 = vsel %vm287, %v280, %v284
    %v289 = vand.u32 2147483647, %v279
    %vm290 = vcmp.eq.f32.partialorder %v289, 8.507059e+37
    %v291 = vand.u32 %v279, 2147483648
    %v292 = vor.u32 1.1754944e-38, %v291
    %v293 = vsel %vm290, %v292, %v288
    %v294 = vmul.f32 1.0, %v293
    %v295 = vtanh.pop %v275
    %v297 = vrot.slane %v239, 7
    %v299 = vmul.f32 %v294, %v297
    %301 = vrot.lane.b32.xlu0 %v295, 64
    %v302 = vpop.permute.xlu0 %301
    %v304 = vmul.f32 %v294, %v302
    %306 = vrot.lane.b32.xlu0 %v304, 32
    %v307 = vpop.permute.xlu0 %306
    %v309 = vadd.f32 %v299, %v307
    %v310 = vtanh.pop %v309
    %312 = vrot.lane.b32.xlu0 %v310, 64
    %v313 = vpop.permute.xlu0 %312
    %v315 = vmul.f32 %v294, %v313
    %v317 = vrot.slane %v315, 3
    %318 = vrot.lane.b32.xlu0 %v317, 32
    %v319 = vpop.permute.xlu0 %318
    %v320 = vsel %vm45, %v319, 0
    %322 = vmatpush.msra.mxu0 0.0
    %323 = vmatpush.msra.mxu0 0.0
    %324 = vmatpush.msra.mxu0 0.0
    %325 = vmatpush.msra.mxu0 0.0
    %326 = vmatpush.msra.mxu0 0.0
    %327 = vmatpush.msra.mxu0 0.0
    %328 = vmatpush.msra.mxu0 0.0
    %329 = vmatpush.msra.mxu0 0.0
    %330 = vmatpush.msra.mxu0 0.0
    %331 = vmatpush.msra.mxu0 0.0
    %332 = vmatpush.msra.mxu0 0.0
    %333 = vmatpush.msra.mxu0 0.0
    %334 = vmatpush.msra.mxu0 %v31
    %335 = vmatpush.msra.mxu0 %v30
    %336 = vmatpush.msra.mxu0 %v29
    %337 = vmatpush.msra.mxu0 %v28
    %338 = vmatmul.f32.gmra.mxu0 %v320
    %v339 = vpop.f32.mrf.mxu0
    %v340 = vadd.f32 0.0, %v339
    %341 = vdwg.mxu0
    %v343 = vrot.slane %v340, 4
    %v345 = vadd.f32 %v44, %v343
    %v346 = vxor.u32 %v345, 2147483648
    %v347 = vmul.f32 %v346, 1.442695
    %v348 = vpow.pop %v347
    %v349 = vadd.f32 %v348, 1.0
    %v350 = vrcp.pop %v349
    %v351 = vmul.f32 %v349, %v350
    %v352 = vsub.f32 1.0, %v351
    %v353 = vmul.f32 %v350, %v352
    %v354 = vadd.f32 %v350, %v353
    %vm355 = vweird.f32 %v349
    %vm356 = vweird.f32 %v350
    %vm357 = vmor %vm355, %vm356
    %v358 = vsel %vm357, %v350, %v354
    %v359 = vand.u32 2147483647, %v349
    %vm360 = vcmp.eq.f32.partialorder %v359, 8.507059e+37
    %v361 = vand.u32 %v349, 2147483648
    %v362 = vor.u32 1.1754944e-38, %v361
    %v363 = vsel %vm360, %v362, %v358
    %v364 = vmul.f32 1.0, %v363
    %v365 = vtanh.pop %v345
    %v367 = vrot.slane %v309, 7
    %v369 = vmul.f32 %v364, %v367
    %371 = vrot.lane.b32.xlu0 %v365, 64
    %v372 = vpop.permute.xlu0 %371
    %v374 = vmul.f32 %v364, %v372
    %376 = vrot.lane.b32.xlu0 %v374, 32
    %v377 = vpop.permute.xlu0 %376
    %v379 = vadd.f32 %v369, %v377
    %v380 = vtanh.pop %v379
    %382 = vrot.lane.b32.xlu0 %v380, 64
    %v383 = vpop.permute.xlu0 %382
    %v385 = vmul.f32 %v364, %v383
    %v387 = vrot.slane %v385, 4
    %388 = vrot.lane.b32.xlu0 %v387, 32
    %v389 = vpop.permute.xlu0 %388
    %v390 = vsel %vm45, %v389, 0
    %392 = vmatpush.msra.mxu0 0.0
    %393 = vmatpush.msra.mxu0 0.0
    %394 = vmatpush.msra.mxu0 0.0
    %395 = vmatpush.msra.mxu0 0.0
    %396 = vmatpush.msra.mxu0 0.0
    %397 = vmatpush.msra.mxu0 0.0
    %398 = vmatpush.msra.mxu0 0.0
    %399 = vmatpush.msra.mxu0 0.0
    %400 = vmatpush.msra.mxu0 0.0
    %401 = vmatpush.msra.mxu0 0.0
    %402 = vmatpush.msra.mxu0 0.0
    %403 = vmatpush.msra.mxu0 0.0
    %404 = vmatpush.msra.mxu0 %v31
    %405 = vmatpush.msra.mxu0 %v30
    %406 = vmatpush.msra.mxu0 %v29
    %407 = vmatpush.msra.mxu0 %v28
    %408 = vmatmul.f32.gmra.mxu0 %v390
    %v409 = vpop.f32.mrf.mxu0
    %v410 = vadd.f32 0.0, %v409
    %411 = vdwg.mxu0
    %v413 = vrot.slane %v410, 3
    %v415 = vadd.f32 %v44, %v413
    %v416 = vxor.u32 %v415, 2147483648
    %v417 = vmul.f32 %v416, 1.442695
    %v418 = vpow.pop %v417
    %v419 = vadd.f32 %v418, 1.0
    %v420 = vrcp.pop %v419
    %v421 = vmul.f32 %v419, %v420
    %v422 = vsub.f32 1.0, %v421
    %v423 = vmul.f32 %v420, %v422
    %v424 = vadd.f32 %v420, %v423
    %vm425 = vweird.f32 %v419
    %vm426 = vweird.f32 %v420
    %vm427 = vmor %vm425, %vm426
    %v428 = vsel %vm427, %v420, %v424
    %v429 = vand.u32 2147483647, %v419
    %vm430 = vcmp.eq.f32.partialorder %v429, 8.507059e+37
    %v431 = vand.u32 %v419, 2147483648
    %v432 = vor.u32 1.1754944e-38, %v431
    %v433 = vsel %vm430, %v432, %v428
    %v434 = vmul.f32 1.0, %v433
    %v435 = vtanh.pop %v415
    %v437 = vrot.slane %v379, 7
    %v439 = vmul.f32 %v434, %v437
    %441 = vrot.lane.b32.xlu0 %v435, 64
    %v442 = vpop.permute.xlu0 %441
    %v444 = vmul.f32 %v434, %v442
    %446 = vrot.lane.b32.xlu0 %v444, 32
    %v447 = vpop.permute.xlu0 %446
    %v449 = vadd.f32 %v439, %v447
    %v450 = vtanh.pop %v449
    %452 = vrot.lane.b32.xlu0 %v450, 64
    %v453 = vpop.permute.xlu0 %452
    %v455 = vmul.f32 %v434, %v453
    %v457 = vrot.slane %v455, 5
    %458 = vrot.lane.b32.xlu0 %v457, 32
    %v459 = vpop.permute.xlu0 %458
    %v460 = vsel %vm45, %v459, 0
    %462 = vmatpush.msra.mxu0 0.0
    %463 = vmatpush.msra.mxu0 0.0
    %464 = vmatpush.msra.mxu0 0.0
    %465 = vmatpush.msra.mxu0 0.0
    %466 = vmatpush.msra.mxu0 0.0
    %467 = vmatpush.msra.mxu0 0.0
    %468 = vmatpush.msra.mxu0 0.0
    %469 = vmatpush.msra.mxu0 0.0
    %470 = vmatpush.msra.mxu0 0.0
    %471 = vmatpush.msra.mxu0 0.0
    %472 = vmatpush.msra.mxu0 0.0
    %473 = vmatpush.msra.mxu0 0.0
    %474 = vmatpush.msra.mxu0 %v31
    %475 = vmatpush.msra.mxu0 %v30
    %476 = vmatpush.msra.mxu0 %v29
    %477 = vmatpush.msra.mxu0 %v28
    %478 = vmatmul.f32.gmra.mxu0 %v460
    %v479 = vpop.f32.mrf.mxu0
    %v480 = vadd.f32 0.0, %v479
    %481 = vdwg.mxu0
    %v483 = vrot.slane %v480, 2
    %v485 = vadd.f32 %v44, %v483
    %v486 = vxor.u32 %v485, 2147483648
    %v487 = vmul.f32 %v486, 1.442695
    %v488 = vpow.pop %v487
    %v489 = vadd.f32 %v488, 1.0
    %v490 = vrcp.pop %v489
    %v491 = vmul.f32 %v489, %v490
    %v492 = vsub.f32 1.0, %v491
    %v493 = vmul.f32 %v490, %v492
    %v494 = vadd.f32 %v490, %v493
    %vm495 = vweird.f32 %v489
    %vm496 = vweird.f32 %v490
    %vm497 = vmor %vm495, %vm496
    %v498 = vsel %vm497, %v490, %v494
    %v499 = vand.u32 2147483647, %v489
    %vm500 = vcmp.eq.f32.partialorder %v499, 8.507059e+37
    %v501 = vand.u32 %v489, 2147483648
    %v502 = vor.u32 1.1754944e-38, %v501
    %v503 = vsel %vm500, %v502, %v498
    %v504 = vmul.f32 1.0, %v503
    %v505 = vtanh.pop %v485
    %v507 = vrot.slane %v449, 7
    %v509 = vmul.f32 %v504, %v507
    %511 = vrot.lane.b32.xlu0 %v505, 64
    %v512 = vpop.permute.xlu0 %511
    %v514 = vmul.f32 %v504, %v512
    %516 = vrot.lane.b32.xlu0 %v514, 32
    %v517 = vpop.permute.xlu0 %516
    %v519 = vadd.f32 %v509, %v517
    %v520 = vtanh.pop %v519
    %522 = vrot.lane.b32.xlu0 %v520, 64
    %v523 = vpop.permute.xlu0 %522
    %v525 = vmul.f32 %v504, %v523
    %v527 = vrot.slane %v525, 6
    %528 = vrot.lane.b32.xlu0 %v527, 32
    %v529 = vpop.permute.xlu0 %528
    %v530 = vsel %vm45, %v529, 0
    %532 = vmatpush.msra.mxu0 0.0
    %533 = vmatpush.msra.mxu0 0.0
    %534 = vmatpush.msra.mxu0 0.0
    %535 = vmatpush.msra.mxu0 0.0
    %536 = vmatpush.msra.mxu0 0.0
    %537 = vmatpush.msra.mxu0 0.0
    %538 = vmatpush.msra.mxu0 0.0
    %539 = vmatpush.msra.mxu0 0.0
    %540 = vmatpush.msra.mxu0 0.0
    %541 = vmatpush.msra.mxu0 0.0
    %542 = vmatpush.msra.mxu0 0.0
    %543 = vmatpush.msra.mxu0 0.0
    %544 = vmatpush.msra.mxu0 %v31
    %545 = vmatpush.msra.mxu0 %v30
    %546 = vmatpush.msra.mxu0 %v29
    %547 = vmatpush.msra.mxu0 %v28
    %548 = vmatmul.f32.gmra.mxu0 %v530
    %v549 = vpop.f32.mrf.mxu0
    %v550 = vadd.f32 0.0, %v549
    %551 = vdwg.mxu0
    %v553 = vrot.slane %v550, 1
    %v555 = vadd.f32 %v44, %v553
    %v556 = vxor.u32 %v555, 2147483648
    %v557 = vmul.f32 %v556, 1.442695
    %v558 = vpow.pop %v557
    %v559 = vadd.f32 %v558, 1.0
    %v560 = vrcp.pop %v559
    %v561 = vmul.f32 %v559, %v560
    %v562 = vsub.f32 1.0, %v561
    %v563 = vmul.f32 %v560, %v562
    %v564 = vadd.f32 %v560, %v563
    %vm565 = vweird.f32 %v559
    %vm566 = vweird.f32 %v560
    %vm567 = vmor %vm565, %vm566
    %v568 = vsel %vm567, %v560, %v564
    %v569 = vand.u32 2147483647, %v559
    %vm570 = vcmp.eq.f32.partialorder %v569, 8.507059e+37
    %v571 = vand.u32 %v559, 2147483648
    %v572 = vor.u32 1.1754944e-38, %v571
    %v573 = vsel %vm570, %v572, %v568
    %v574 = vmul.f32 1.0, %v573
    %v575 = vtanh.pop %v555
    %v577 = vrot.slane %v519, 7
    %v579 = vmul.f32 %v574, %v577
    %581 = vrot.lane.b32.xlu0 %v575, 64
    %v582 = vpop.permute.xlu0 %581
    %v584 = vmul.f32 %v574, %v582
    %586 = vrot.lane.b32.xlu0 %v584, 32
    %v587 = vpop.permute.xlu0 %586
    %v589 = vadd.f32 %v579, %v587
    %v590 = vtanh.pop %v589
    %592 = vrot.lane.b32.xlu0 %v590, 64
    %v593 = vpop.permute.xlu0 %592
    %v595 = vmul.f32 %v574, %v593
    %v597 = vrot.slane %v34, 1
    %598 = vrot.lane.b32.xlu0 %v597, 96
    %v599 = vpop.permute.xlu0 %598
    %v601 = vmul.f32 %v595, %v599
    %603 = vrot.lane.b32.xlu0 %v601, 32
    %v604 = vpop.permute.xlu0 %603
    %vm606 = vcmask 261127
    %v607 = vsel %vm606, %v604, 0.0
    %608 = vadd.xlane.f32.xlu0 %v607
    %v609 = vpop.xlane.xlu0 %608
    %v610 = vadd.f32 %v609, %v599
    %vm611 = vcmask 7175
    %612 = vst.msk [vmem:[#allocation5 - $0x7] sm:$0x80] %vm611, %v610
    // Predicated region
    $region14: #{lstm_bitcoin_forward.1} parent=1 // pred_check
      _
    $region15: #{lstm_bitcoin_forward.1} parent=1 // pred_check_branch
      %614 = sbr.rel (0) target = $region17
    $region16: #{lstm_bitcoin_forward.1} parent=1 // pred_region
      %616 = vsyncadd [#allocation4], 0
      %s618 = sshll.u32 [#allocation5], 4
      %s619 = int_to_ptr.vmem [resolvable:$true] %s618
      %s620 = sshll.u32 %s2, 4
      %s621 = int_to_ptr.hbm [resolvable:$true] %s620
      %623 = dma.vmem_to_hbm [thread:$0]  %s619, 16, %s621, [#allocation4]
    $region17: #{lstm_bitcoin_forward.1} parent=1 // pred_fallthru
      _
    // Predicated region
    $region18: #{lstm_bitcoin_forward.1} parent=1 // pred_check
      _
    $region19: #{lstm_bitcoin_forward.1} parent=1 // pred_check_branch
      %625 = sbr.rel (0) target = $region21
    $region20: #{lstm_bitcoin_forward.1} parent=1 // pred_region
      %627 = dma.done [#allocation4], 16
    $region21: #{lstm_bitcoin_forward.1} parent=1 // pred_fallthru
      _
    %628 = vsyncpa [#allocation3], 1
    %629 = vsyncpa [#allocation4], 1

</llo_original>
